<compile_context>
chip_gen: v7x
topology: tpu7x:2x2x1
jax: 0.10.0
libtpu: 0.0.40
codegen_flags: <defaults>
</compile_context>

<pallas_src>
import jax
import jax.numpy as jnp
from jax import lax
from jax.experimental import pallas as pl
from jax.experimental.pallas import tpu as pltpu


def _round_up(x, m):
    return -(-x // m) * m


def _reduce_max_kernel(x_ref, vals_ref, idx_ref):
    # x_ref: (TM, N) f32 tile in VMEM; vals_ref/idx_ref: (1, TM) lane-dense.
    x = x_ref[...]
    n = x.shape[-1]

    # Cross-lane max (keepdim) -> (TM, 1).
    mx = jnp.max(x, axis=-1, keepdims=True)

    # First-occurrence argmax with a single (1, N) iota row broadcast over
    # sublanes (no full (TM, N) int32 iota temp).
    # NaN rows: jnp.max propagates NaN so (x == mx) is all-False; fall back to
    # the first NaN's index (torch-like).  On v7x, if the VALU slot ever binds
    # this |isnan| term is the first candidate to fold; on v5e/v6e the kernel
    # is HBM-bound so these VPU ops are free filler.
    iota_row = lax.broadcasted_iota(jnp.int32, (1, n), 1)         # (1, N)
    hit = (x == mx) | jnp.isnan(x)                                # (TM, N)
    masked = jnp.where(hit, iota_row, jnp.int32(n))               # (TM, N)
    idx = jnp.min(masked, axis=-1, keepdims=True)                 # (TM, 1)

    # XLU transposes (idle slot here) so stores are lane-dense (1, TM):
    # unmasked vector stores + contiguous output writeback DMA.
    vals_ref[...] = mx.T
    idx_ref[...] = idx.T


def _choose_row_tile(num_rows, n):
    """Row-tile size: pure byte budget (~8 MiB f32 input per tile), multiple
    of 128 when possible (lane-dense outputs), and >= 2 tiles when there is
    enough work so both v7x TensorCores get a share of the parallel axis."""
    byte_budget = 8 << 20                     # 8 MiB f32 per input tile
    tm = byte_budget // (4 * max(n, 1))
    if tm >= 128:
        tm = tm // 128 * 128
    else:
        # TODO(synk): for N so large that even an 8-row tile blows the budget,
        # add an inner "arbitrary" reduction axis over N with running
        # max/argmax carried in VMEM scratch (pl.when init/finalize).
        tm = max(8, tm // 8 * 8)
    if num_rows >= 2 * 128:
        # keep at least 2 row-tiles so the "parallel" axis can shard across
        # v7x's two TensorCores
        tm = min(tm, _round_up(-(-num_rows // 2), 128))
    tm = min(tm, _round_up(num_rows, 8))      # don't exceed the problem size
    return max(tm, 8)


def reduce_max_negative_dim(a):
    """Pallas equivalent of torch.ops.aten.max(a, -1, keepdim=True)."""
    B, M, N = a.shape
    R = B * M
    x = a.reshape(R, N)

    TM = _choose_row_tile(R, N)
    num_tiles = pl.cdiv(R, TM)
    # No jnp.pad: the ragged edge block is handled by Pallas' masked edge-block
    # reads; the resulting garbage rows are sliced away below.

    vals, idxs = pl.pallas_call(
        _reduce_max_kernel,
        out_shape=(
            jax.ShapeDtypeStruct((num_tiles, TM), a.dtype),      # values
            jax.ShapeDtypeStruct((num_tiles, TM), jnp.int32),    # indices
        ),
        grid=(num_tiles,),
        in_specs=[pl.BlockSpec((TM, N), lambda i: (i, 0))],
        out_specs=(
            pl.BlockSpec((1, TM), lambda i: (i, 0)),
            pl.BlockSpec((1, TM), lambda i: (i, 0)),
        ),
        compiler_params=pltpu.CompilerParams(
            dimension_semantics=("parallel",),        # megacore row-tile sharding
            vmem_limit_bytes=48 * 1024 * 1024,        # < v7x 64 MiB physical
        ),
        cost_estimate=pl.CostEstimate(
            flops=R * N,
            transcendentals=0,
            bytes_accessed=R * N * 4 + R * 8,
        ),
    )(x)

    vals = vals.reshape(num_tiles * TM)[:R].reshape(B, M, 1)
    idxs = idxs.reshape(num_tiles * TM)[:R].reshape(B, M, 1)
    return vals, idxs


if __name__ == "__main__":
    key = jax.random.PRNGKey(0)
    k0, k1 = jax.random.split(key)

    # Small rank-3 f32 input consistent with the module's forward.
    a = jax.random.normal(k0, (2, 16, 32), dtype=jnp.float32)
    vals, idxs = reduce_max_negative_dim(a)
    jax.block_until_ready((vals, idxs))

    ref_vals = jnp.max(a, axis=-1, keepdims=True)
    ref_idxs = jnp.argmax(a, axis=-1, keepdims=True).astype(jnp.int32)
    assert vals.shape == (2, 16, 1) and idxs.shape == (2, 16, 1)
    assert jnp.allclose(vals, ref_vals)
    assert jnp.array_equal(idxs, ref_idxs)

    # Ragged / multi-tile case (R % TM != 0, num_tiles > 1): exercises the
    # masked edge block now that the wrapper-side jnp.pad is gone.
    b = jax.random.normal(k1, (4, 75, 16), dtype=jnp.float32)
    bvals, bidxs = reduce_max_negative_dim(b)
    jax.block_until_ready((bvals, bidxs))
    assert jnp.allclose(bvals, jnp.max(b, axis=-1, keepdims=True))
    assert jnp.array_equal(bidxs,
                           jnp.argmax(b, axis=-1, keepdims=True).astype(jnp.int32))

    print("KERNEL_OK")
</pallas_src>

<mosaic_0001>
module attributes {stable_mosaic.version = 11 : i64} {
  func.func @_reduce_max_kernel(%arg0: i32, %arg1: memref<32x32xf32, #tpu.memory_space<vmem>>, %arg2: memref<1x32xf32, #tpu.memory_space<vmem>>, %arg3: memref<1x32xi32, #tpu.memory_space<vmem>>) attributes {dimension_semantics = [#tpu.dimension_semantics<parallel>], iteration_bounds = array<i64: 1>, scalar_prefetch = 0 : i64, scratch_operands = 0 : i64, tpu.core_type = #tpu.core_type<tc>, window_params = [{transform_indices = @transform_0, window_bounds = array<i64: 32, 32>}, {transform_indices = @transform_1, window_bounds = array<i64: 1, 32>}, {transform_indices = @transform_2, window_bounds = array<i64: 1, 32>}]} {
    %c0 = arith.constant 0 : index
    %c0_0 = arith.constant 0 : index
    %0 = vector.load %arg1[%c0, %c0_0] : memref<32x32xf32, #tpu.memory_space<vmem>>, vector<32x32xf32>
    %cst = arith.constant dense<0xFF800000> : vector<32xf32>
    %1 = vector.multi_reduction <maximumf>, %0, %cst [1] : vector<32x32xf32> to vector<32xf32>
    %2 = vector.shape_cast %1 : vector<32xf32> to vector<32x1xf32>
    %3 = tpu.iota {dimensions = array<i32: 1>} : vector<1x32xi32>
    %4 = vector.broadcast %2 : vector<32x1xf32> to vector<32x32xf32>
    %5 = arith.cmpf oeq, %0, %4 : vector<32x32xf32>
    %6 = arith.cmpf one, %0, %0 : vector<32x32xf32>
    %7 = arith.ori %5, %6 : vector<32x32xi1>
    %c32_i32 = arith.constant 32 : i32
    %8 = vector.shape_cast %3 : vector<1x32xi32> to vector<1x32xi32>
    %9 = vector.broadcast %8 : vector<1x32xi32> to vector<32x32xi32>
    %10 = vector.broadcast %c32_i32 : i32 to vector<32x32xi32>
    %11 = arith.select %7, %9, %10 : vector<32x32xi1>, vector<32x32xi32>
    %cst_1 = arith.constant dense<2147483647> : vector<32xi32>
    %12 = vector.multi_reduction <minsi>, %11, %cst_1 [1] : vector<32x32xi32> to vector<32xi32>
    %13 = vector.shape_cast %12 : vector<32xi32> to vector<32x1xi32>
    %14 = tpu.transpose %2, [1, 0] : vector<32x1xf32> -> vector<1x32xf32>
    %c0_2 = arith.constant 0 : index
    %c0_3 = arith.constant 0 : index
    %15 = vector.load %arg2[%c0_2, %c0_3] : memref<1x32xf32, #tpu.memory_space<vmem>>, vector<1x32xf32>
    tpu.vector_store %arg2[%c0_2, %c0_3], %14 {strides = array<i32>} : memref<1x32xf32, #tpu.memory_space<vmem>>, vector<1x32xf32>,
    %16 = tpu.transpose %13, [1, 0] : vector<32x1xi32> -> vector<1x32xi32>
    %c0_4 = arith.constant 0 : index
    %c0_5 = arith.constant 0 : index
    %17 = vector.load %arg3[%c0_4, %c0_5] : memref<1x32xi32, #tpu.memory_space<vmem>>, vector<1x32xi32>
    tpu.vector_store %arg3[%c0_4, %c0_5], %16 {strides = array<i32>} : memref<1x32xi32, #tpu.memory_space<vmem>>, vector<1x32xi32>,
    return
  }
  func.func @transform_0(%arg0: i32) -> (i32, i32) {
    %c0_i32 = arith.constant 0 : i32
    %c0_i32_0 = arith.constant 0 : i32
    return %arg0, %c0_i32 : i32, i32
  }
  func.func @transform_1(%arg0: i32) -> (i32, i32) {
    %c0_i32 = arith.constant 0 : i32
    %c0_i32_0 = arith.constant 0 : i32
    return %arg0, %c0_i32 : i32, i32
  }
  func.func @transform_2(%arg0: i32) -> (i32, i32) {
    %c0_i32 = arith.constant 0 : i32
    %c0_i32_0 = arith.constant 0 : i32
    return %arg0, %c0_i32 : i32, i32
  }
}

</mosaic_0001>

<llo_original>
// kernel: tpu_custom_call.1
$region0: #{tpu_custom_call.1}
  #allocation0 [shape = 'u32[]', space=smem, size = 0x4, offset = 0x4, fixed_abs, tag = 'smem constant byte address 0x4 - core index']
  #allocation1 [shape = 'u32[144,128]{1,0:T(1,128)}', space=vmem, size = 0x12000, scoped, tag = 'internal scratch']
  %s0 = inlined_call_operand.hbm [shape: f32[32,32], index: 0, kind: input, shape index: {}]
  %s1 = inlined_call_operand.hbm [shape: f32[1,32], index: 1, kind: output, shape index: {0}]
  %s2 = inlined_call_operand.hbm [shape: s32[1,32], index: 2, kind: output, shape index: {1}]
  %3 = xla_tuple %s1, %s2
  %s4 = sld [smem:[#allocation0]]
  $region26: #{tpu_custom_call.1} parent=0
    _
  %s6 = ssub.s32 1, %s4
  %s7 = scalar_select 0, %s6, %s4
  $region1: #{tpu_custom_call.1} parent=0
    #allocation2 [shape = 'u8[16384]{0}', space=vmem, size = 0x4000, scoped, tag = 'input window, operand 0, single buffered']
    #allocation3 [shape = 's32[1]{0}', space=sflag, size = 0x4, scoped, tag = 'scoped memory for tpu_custom_call.1']
    #allocation4 [shape = 's32[1]{0}', space=sflag, size = 0x4, scoped, tag = 'scoped memory for tpu_custom_call.1']
    #allocation5 [shape = 'u8[512]{0}', space=vmem, size = 0x400, scoped, tag = 'output window, operand 0, single buffered']
    #allocation6 [shape = 'u8[512]{0}', space=vmem, size = 0x400, scoped, tag = 'output window, operand 1, single buffered']
    #allocation7 [shape = 's32[1]{0}', space=sflag, size = 0x4, scoped, tag = 'scoped memory for tpu_custom_call.1']
    %8 = vsyncpa [#allocation3], 0
    %9 = vsyncpa [#allocation4], 0
    %10 = vsyncpa [#allocation7], 0
    // Predicated region
    $region2: #{tpu_custom_call.1} parent=1 // pred_check
      _
    $region3: #{tpu_custom_call.1} parent=1 // pred_check_branch
      %12 = sbr.rel (0) target = $region5
    $region4: #{tpu_custom_call.1} parent=1 // pred_region
      %s14 = ssub.s32 512, 512
      %15 = vsyncadd [#allocation3], %s14
      %s16 = sshll.u32 [#allocation2], 4
      %s17 = int_to_ptr.vmem [resolvable:$true] %s16
      %22 = dma.hbm_to_vmem [thread:$0]  %s0, 512, %s17, [#allocation3], 128, 128, 8
    $region5: #{tpu_custom_call.1} parent=1 // pred_fallthru
      _
    // Predicated region
    $region6: #{tpu_custom_call.1} parent=1 // pred_check
      _
    $region7: #{tpu_custom_call.1} parent=1 // pred_check_branch
      %24 = sbr.rel (0) target = $region9
    $region8: #{tpu_custom_call.1} parent=1 // pred_region
      %25 = dma.done [#allocation3], 512
    $region9: #{tpu_custom_call.1} parent=1 // pred_fallthru
      _
    %v26 = vld [vmem:[#allocation2] sm:$0xff]
    %v27 = vld [vmem:[#allocation2 + $0x8] sm:$0xff]
    %v28 = vld [vmem:[#allocation2 + $0x10] sm:$0xff]
    %v29 = vld [vmem:[#allocation2 + $0x18] sm:$0xff]
    %vm30 = vcmask 261120
    %v31 = vsel %vm30, %v26, -inf
    %32 = vmax.xlane.f32.xlu0 %v31
    %v33 = vpop.xlane.xlu0 %32
    %v34 = vsel %vm30, %v27, -inf
    %35 = vmax.xlane.f32.xlu0 %v34
    %v36 = vpop.xlane.xlu0 %35
    %v37 = vsel %vm30, %v28, -inf
    %38 = vmax.xlane.f32.xlu0 %v37
    %v39 = vpop.xlane.xlu0 %38
    %v40 = vsel %vm30, %v29, -inf
    %41 = vmax.xlane.f32.xlu0 %v40
    %v42 = vpop.xlane.xlu0 %41
    %v43 = vlaneseq
    %v44 = vand.u32 %v43, 127
    %vm45 = vcmp.eq.f32.partialorder %v26, %v33
    %vm46 = vcmp.eq.f32.partialorder %v27, %v36
    %vm47 = vcmp.eq.f32.partialorder %v28, %v39
    %vm48 = vcmp.eq.f32.partialorder %v29, %v42
    %vm49 = vcmp.ne.f32.partialorder %v26, %v26
    %vm50 = vcmp.ne.f32.partialorder %v27, %v27
    %vm51 = vcmp.ne.f32.partialorder %v28, %v28
    %vm52 = vcmp.ne.f32.partialorder %v29, %v29
    %vm53 = vmor %vm45, %vm49
    %vm54 = vmor %vm46, %vm50
    %vm55 = vmor %vm47, %vm51
    %vm56 = vmor %vm48, %vm52
    %v57 = vsel %vm53, %v44, 32
    %v58 = vsel %vm54, %v44, 32
    %v59 = vsel %vm55, %v44, 32
    %v60 = vsel %vm56, %v44, 32
    %v61 = vsel %vm30, %v57, 2147483647
    %v62 = vand.u32 %v61, 65535
    %v63 = vshra.s32 %v61, 16
    %v64 = vcvt.s32.f32 %v62
    %v65 = vcvt.s32.f32 %v63
    %66 = vmin.xlane.f32.xlu0 %v65
    %v67 = vpop.xlane.xlu0 %66
    %vm68 = vcmp.eq.f32.partialorder %v65, %v67
    %v69 = vsel %vm68, %v64, inf
    %70 = vmin.xlane.f32.xlu0 %v69
    %v71 = vpop.xlane.xlu0 %70
    %v72 = vcvt.f32.s32 %v71
    %v73 = vcvt.f32.s32 %v67
    %v74 = vshll.u32 %v73, 16
    %v75 = vadd.s32 %v74, %v72
    %v76 = vsel %vm30, %v58, 2147483647
    %v77 = vand.u32 %v76, 65535
    %v78 = vshra.s32 %v76, 16
    %v79 = vcvt.s32.f32 %v77
    %v80 = vcvt.s32.f32 %v78
    %81 = vmin.xlane.f32.xlu0 %v80
    %v82 = vpop.xlane.xlu0 %81
    %vm83 = vcmp.eq.f32.partialorder %v80, %v82
    %v84 = vsel %vm83, %v79, inf
    %85 = vmin.xlane.f32.xlu0 %v84
    %v86 = vpop.xlane.xlu0 %85
    %v87 = vcvt.f32.s32 %v86
    %v88 = vcvt.f32.s32 %v82
    %v89 = vshll.u32 %v88, 16
    %v90 = vadd.s32 %v89, %v87
    %v91 = vsel %vm30, %v59, 2147483647
    %v92 = vand.u32 %v91, 65535
    %v93 = vshra.s32 %v91, 16
    %v94 = vcvt.s32.f32 %v92
    %v95 = vcvt.s32.f32 %v93
    %96 = vmin.xlane.f32.xlu0 %v95
    %v97 = vpop.xlane.xlu0 %96
    %vm98 = vcmp.eq.f32.partialorder %v95, %v97
    %v99 = vsel %vm98, %v94, inf
    %100 = vmin.xlane.f32.xlu0 %v99
    %v101 = vpop.xlane.xlu0 %100
    %v102 = vcvt.f32.s32 %v101
    %v103 = vcvt.f32.s32 %v97
    %v104 = vshll.u32 %v103, 16
    %v105 = vadd.s32 %v104, %v102
    %v106 = vsel %vm30, %v60, 2147483647
    %v107 = vand.u32 %v106, 65535
    %v108 = vshra.s32 %v106, 16
    %v109 = vcvt.s32.f32 %v107
    %v110 = vcvt.s32.f32 %v108
    %111 = vmin.xlane.f32.xlu0 %v110
    %v112 = vpop.xlane.xlu0 %111
    %vm113 = vcmp.eq.f32.partialorder %v110, %v112
    %v114 = vsel %vm113, %v109, inf
    %115 = vmin.xlane.f32.xlu0 %v114
    %v116 = vpop.xlane.xlu0 %115
    %v117 = vcvt.f32.s32 %v116
    %v118 = vcvt.f32.s32 %v112
    %v119 = vshll.u32 %v118, 16
    %v120 = vadd.s32 %v119, %v117
    %121 = vxpose.xlu0.b32.start [1/16] %v33, 128
    %122 = vxpose.xlu0.b32.cont [2/16] %v36, 128
    %123 = vxpose.xlu0.b32.cont [3/16] %v39, 128
    %124 = vxpose.xlu0.b32.cont [4/16] %v42, 128
    %125 = vxpose.xlu0.b32.cont [5/16] 0.0, 128
    %126 = vxpose.xlu0.b32.cont [6/16] 0.0, 128
    %127 = vxpose.xlu0.b32.cont [7/16] 0.0, 128
    %128 = vxpose.xlu0.b32.cont [8/16] 0.0, 128
    %129 = vxpose.xlu0.b32.cont [9/16] 0.0, 128
    %130 = vxpose.xlu0.b32.cont [10/16] 0.0, 128
    %131 = vxpose.xlu0.b32.cont [11/16] 0.0, 128
    %132 = vxpose.xlu0.b32.cont [12/16] 0.0, 128
    %133 = vxpose.xlu0.b32.cont [13/16] 0.0, 128
    %134 = vxpose.xlu0.b32.cont [14/16] 0.0, 128
    %135 = vxpose.xlu0.b32.cont [15/16] 0.0, 128
    %136 = vxpose.xlu0.b32.end [16/16] 0.0, 128
    %v137 = vpop.trf.xlu0
    %v138 = vpop.trf.xlu0
    %v139 = vpop.trf.xlu0
    %v140 = vpop.trf.xlu0
    %v141 = vpop.trf.xlu0
    %v142 = vpop.trf.xlu0
    %v143 = vpop.trf.xlu0
    %v144 = vpop.trf.xlu0
    %v145 = vpop.trf.xlu0
    %v146 = vpop.trf.xlu0
    %v147 = vpop.trf.xlu0
    %v148 = vpop.trf.xlu0
    %v149 = vpop.trf.xlu0
    %v150 = vpop.trf.xlu0
    %v151 = vpop.trf.xlu0
    %v152 = vpop.trf.xlu0
    %vm153 = vcmask 253952
    %154 = vst.msk [vmem:[#allocation5] sm:$0x1] %vm153, %v137
    %155 = vxpose.xlu0.b32.start [1/16] %v75, 128
    %156 = vxpose.xlu0.b32.cont [2/16] %v90, 128
    %157 = vxpose.xlu0.b32.cont [3/16] %v105, 128
    %158 = vxpose.xlu0.b32.cont [4/16] %v120, 128
    %159 = vxpose.xlu0.b32.cont [5/16] 0, 128
    %160 = vxpose.xlu0.b32.cont [6/16] 0, 128
    %161 = vxpose.xlu0.b32.cont [7/16] 0, 128
    %162 = vxpose.xlu0.b32.cont [8/16] 0, 128
    %163 = vxpose.xlu0.b32.cont [9/16] 0, 128
    %164 = vxpose.xlu0.b32.cont [10/16] 0, 128
    %165 = vxpose.xlu0.b32.cont [11/16] 0, 128
    %166 = vxpose.xlu0.b32.cont [12/16] 0, 128
    %167 = vxpose.xlu0.b32.cont [13/16] 0, 128
    %168 = vxpose.xlu0.b32.cont [14/16] 0, 128
    %169 = vxpose.xlu0.b32.cont [15/16] 0, 128
    %170 = vxpose.xlu0.b32.end [16/16] 0, 128
    %v171 = vpop.trf.xlu0
    %v172 = vpop.trf.xlu0
    %v173 = vpop.trf.xlu0
    %v174 = vpop.trf.xlu0
    %v175 = vpop.trf.xlu0
    %v176 = vpop.trf.xlu0
    %v177 = vpop.trf.xlu0
    %v178 = vpop.trf.xlu0
    %v179 = vpop.trf.xlu0
    %v180 = vpop.trf.xlu0
    %v181 = vpop.trf.xlu0
    %v182 = vpop.trf.xlu0
    %v183 = vpop.trf.xlu0
    %v184 = vpop.trf.xlu0
    %v185 = vpop.trf.xlu0
    %v186 = vpop.trf.xlu0
    %187 = vst.msk [vmem:[#allocation6] sm:$0x1] %vm153, %v171
    // Predicated region
    $region10: #{tpu_custom_call.1} parent=1 // pred_check
      _
    $region11: #{tpu_custom_call.1} parent=1 // pred_check_branch
      %189 = sbr.rel (0) target = $region13
    $region12: #{tpu_custom_call.1} parent=1 // pred_region
      %s191 = ssub.s32 16, 16
      %192 = vsyncadd [#allocation4], %s191
      %s194 = sshll.u32 [#allocation5], 4
      %s195 = int_to_ptr.vmem [resolvable:$true] %s194
      %197 = dma.vmem_to_hbm [thread:$0]  %s195, 16, %s1, [#allocation4]
    $region13: #{tpu_custom_call.1} parent=1 // pred_fallthru
      _
    // Predicated region
    $region14: #{tpu_custom_call.1} parent=1 // pred_check
      _
    $region15: #{tpu_custom_call.1} parent=1 // pred_check_branch
      %199 = sbr.rel (0) target = $region17
    $region16: #{tpu_custom_call.1} parent=1 // pred_region
      %s201 = ssub.s32 16, 16
      %202 = vsyncadd [#allocation7], %s201
      %s204 = sshll.u32 [#allocation6], 4
      %s205 = int_to_ptr.vmem [resolvable:$true] %s204
      %207 = dma.vmem_to_hbm [thread:$0]  %s205, 16, %s2, [#allocation7]
    $region17: #{tpu_custom_call.1} parent=1 // pred_fallthru
      _
    // Predicated region
    $region18: #{tpu_custom_call.1} parent=1 // pred_check
      _
    $region19: #{tpu_custom_call.1} parent=1 // pred_check_branch
      %209 = sbr.rel (0) target = $region21
    $region20: #{tpu_custom_call.1} parent=1 // pred_region
      %210 = dma.done [#allocation4], 16
    $region21: #{tpu_custom_call.1} parent=1 // pred_fallthru
      _
    // Predicated region
    $region22: #{tpu_custom_call.1} parent=1 // pred_check
      _
    $region23: #{tpu_custom_call.1} parent=1 // pred_check_branch
      %212 = sbr.rel (0) target = $region25
    $region24: #{tpu_custom_call.1} parent=1 // pred_region
      %213 = dma.done [#allocation7], 16
    $region25: #{tpu_custom_call.1} parent=1 // pred_fallthru
      _
    %214 = vsyncpa [#allocation3], 1
    %215 = vsyncpa [#allocation4], 1
    %216 = vsyncpa [#allocation7], 1

</llo_original>
